<compile_context>
chip_gen: v6e
topology: v6e:2x2x1
jax: 0.10.0
libtpu: 0.0.40
codegen_flags: <defaults>
</compile_context>

<pallas_src>
import math
import functools

import numpy as np
import jax
import jax.numpy as jnp
from jax import lax
from jax.experimental import pallas as pl
from jax.experimental.pallas import tpu as pltpu


def _round_up(x, m):
    return ((x + m - 1) // m) * m


def _embeddings_kernel(ids_ref, table_ref, gamma_ref, beta_ref, out_ref,
                       *, hidden_dim, eps):
    tile = out_ref.shape[0]
    k_pad = table_ref.shape[0]

    ids = ids_ref[...]                                     # (TILE, 3) int32
    iota = lax.broadcasted_iota(jnp.int32, (tile, k_pad), 1)

    # Multi-hot: one 1 per id column.  Index ranges (tok / pos / seg) are
    # disjoint by construction in the wrapper, so OR == sum.
    oh = ((ids[:, 0:1] == iota) |
          (ids[:, 1:2] == iota) |
          (ids[:, 2:3] == iota)).astype(jnp.float32)       # (TILE, K)

    # Fused gather+add of tok/pos/seg rows: single MXU matmul.
    e = jnp.dot(oh, table_ref[...],
                preferred_element_type=jnp.float32)        # (TILE, D) f32

    mean = jnp.mean(e, axis=-1, keepdims=True)
    diff = e - mean
    # torch.Tensor.std() default: unbiased (divide by N-1)
    std = jnp.sqrt(jnp.sum(diff * diff, axis=-1, keepdims=True)
                   / (hidden_dim - 1))
    # PLUS LayerNorm quirk: (x - mean) / sqrt(std + eps)   (rsqrt -> EUP slot)
    x = diff * lax.rsqrt(std + eps)
    out_ref[...] = gamma_ref[...] * x + beta_ref[...]
    # TODO(synk): nn.Dropout omitted (identity, i.e. eval-mode behaviour).


def embeddings_forward(tok_ids, seg_ids, tok_w, pos_w, seg_w, gamma, beta,
                       eps=1e-12, tile=512):
    """Pallas forward pass of Embeddings.

    tok_ids, seg_ids : (B, S) int32
    tok_w            : (vocab, D) f32
    pos_w            : (max_len+3, D) f32  (sinusoidal PE buffer or table)
    seg_w            : (2, D) f32
    gamma, beta      : (D,) f32
    returns          : (B, S, D) f32
    """
    B, S = tok_ids.shape
    V, D = tok_w.shape
    P = pos_w.shape[0]
    N = B * S

    # Row tile: multiple of 8 sublanes; shrink for tiny inputs, pad N to a
    # whole number of tiles.
    if N < tile:
        tile = max(8, _round_up(N, 8))
    n_pad = _round_up(N, tile)

    # Pad each table's row count to a multiple of 8 and concatenate into one
    # resident VMEM table.  Padded rows are never selected by any valid index.
    v_pad = _round_up(V, 8)
    p_pad = _round_up(P, 8)
    s_pad = _round_up(2, 8)
    k_pad = v_pad + p_pad + s_pad

    table = jnp.zeros((k_pad, D), jnp.float32)
    table = table.at[:V].set(tok_w.astype(jnp.float32))
    table = table.at[v_pad:v_pad + P].set(pos_w.astype(jnp.float32))
    table = table.at[v_pad + p_pad:v_pad + p_pad + 2].set(
        seg_w.astype(jnp.float32).reshape(2, D))

    # Per-row indices, pre-offset into the concatenated table and packed into
    # one (n_pad, 3) int32 input (single DMA stream, no in-kernel offset adds).
    tok_col = tok_ids.reshape(N).astype(jnp.int32)
    pos_col = (jnp.arange(N, dtype=jnp.int32) % S) + v_pad
    seg_col = seg_ids.reshape(N).astype(jnp.int32) + (v_pad + p_pad)
    ids = jnp.zeros((n_pad, 3), jnp.int32)
    ids = ids.at[:N, 0].set(tok_col)
    ids = ids.at[:N, 1].set(pos_col)
    ids = ids.at[:N, 2].set(seg_col)

    gamma2 = gamma.astype(jnp.float32).reshape(1, D)
    beta2 = beta.astype(jnp.float32).reshape(1, D)

    kernel = functools.partial(_embeddings_kernel, hidden_dim=D, eps=eps)

    out = pl.pallas_call(
        kernel,
        out_shape=jax.ShapeDtypeStruct((n_pad, D), jnp.float32),
        grid=(n_pad // tile,),
        in_specs=[
            pl.BlockSpec((tile, 3), lambda i: (i, 0)),     # packed ids
            pl.BlockSpec((k_pad, D), lambda i: (0, 0)),    # fused table (resident)
            pl.BlockSpec((1, D), lambda i: (0, 0)),        # gamma
            pl.BlockSpec((1, D), lambda i: (0, 0)),        # beta
        ],
        out_specs=pl.BlockSpec((tile, D), lambda i: (i, 0)),
        compiler_params=pltpu.CompilerParams(
            dimension_semantics=("parallel",)),
    )(ids, table, gamma2, beta2)

    return out[:N].reshape(B, S, D)


def sinusoidal_pe(max_len, dim):
    """Same construction as PositionalEncoding.__init__ (deterministic buffer)."""
    position = np.arange(max_len, dtype=np.float32)[:, None]
    div_term = np.exp(np.arange(0, dim, 2, dtype=np.float32)
                      * -(math.log(10000.0) / dim))
    pe = np.zeros((max_len, dim), dtype=np.float32)
    pe[:, 0::2] = np.sin(position * div_term)
    pe[:, 1::2] = np.cos(position * div_term)
    return jnp.asarray(pe)


def reference_forward(tok_ids, seg_ids, tok_w, pos_w, seg_w, gamma, beta,
                      eps=1e-12):
    """Pure-JAX reference mirroring the PyTorch module (dropout = identity)."""
    B, S = tok_ids.shape
    e = tok_w[tok_ids] + pos_w[:S][None, :, :] + seg_w[seg_ids]
    mean = e.mean(-1, keepdims=True)
    std = jnp.std(e, axis=-1, ddof=1, keepdims=True)   # unbiased, like torch
    xn = (e - mean) / jnp.sqrt(std + eps)
    return gamma * xn + beta


if __name__ == "__main__":
    # cfg: input_dim(vocab)=32, hidden_dim=128, max_len=16, pos_encode=True
    B, S = 2, 8
    VOCAB, D, MAX_LEN = 32, 128, 16

    key = jax.random.PRNGKey(0)
    k_tok, k_seg, k_tw, k_sw = jax.random.split(key, 4)

    tok_ids = jax.random.randint(k_tok, (B, S), 0, VOCAB, dtype=jnp.int32)
    seg_ids = jax.random.randint(k_seg, (B, S), 0, 2, dtype=jnp.int32)

    tok_w = 0.02 * jax.random.normal(k_tw, (VOCAB, D), dtype=jnp.float32)
    seg_w = 0.02 * jax.random.normal(k_sw, (2, D), dtype=jnp.float32)
    pos_w = sinusoidal_pe(MAX_LEN + 3, D)              # PositionalEncoding buffer
    gamma = jnp.ones((D,), jnp.float32)                # LayerNorm.gamma
    beta = jnp.zeros((D,), jnp.float32)                # LayerNorm.beta

    out = embeddings_forward(tok_ids, seg_ids, tok_w, pos_w, seg_w, gamma, beta)
    out = jax.block_until_ready(out)

    ref = reference_forward(tok_ids, seg_ids, tok_w, pos_w, seg_w, gamma, beta)
    assert out.shape == (B, S, D), out.shape
    np.testing.assert_allclose(np.asarray(out), np.asarray(ref),
                               rtol=1e-5, atol=1e-5)
    print("KERNEL_OK")
</pallas_src>

<mosaic_0001>
module attributes {stable_mosaic.version = 11 : i64} {
  func.func @_embeddings_kernel(%arg0: i32, %arg1: memref<16x3xi32, #tpu.memory_space<vmem>>, %arg2: memref<64x128xf32, #tpu.memory_space<vmem>>, %arg3: memref<1x128xf32, #tpu.memory_space<vmem>>, %arg4: memref<1x128xf32, #tpu.memory_space<vmem>>, %arg5: memref<16x128xf32, #tpu.memory_space<vmem>>) attributes {dimension_semantics = [#tpu.dimension_semantics<parallel>], iteration_bounds = array<i64: 1>, scalar_prefetch = 0 : i64, scratch_operands = 0 : i64, tpu.core_type = #tpu.core_type<tc>, window_params = [{transform_indices = @transform_0, window_bounds = array<i64: 16, 3>}, {pipeline_mode = #tpu.pipeline_mode<synchronous>, transform_indices = @transform_1, window_bounds = array<i64: 64, 128>}, {pipeline_mode = #tpu.pipeline_mode<synchronous>, transform_indices = @transform_2, window_bounds = array<i64: 1, 128>}, {pipeline_mode = #tpu.pipeline_mode<synchronous>, transform_indices = @transform_3, window_bounds = array<i64: 1, 128>}, {transform_indices = @transform_4, window_bounds = array<i64: 16, 128>}]} {
    %c0 = arith.constant 0 : index
    %c0_0 = arith.constant 0 : index
    %0 = vector.load %arg1[%c0, %c0_0] : memref<16x3xi32, #tpu.memory_space<vmem>>, vector<16x3xi32>
    %1 = tpu.iota {dimensions = array<i32: 1>} : vector<16x64xi32>
    %2 = vector.extract_strided_slice %0 {offsets = [0, 0], sizes = [16, 1], strides = [1, 1]} : vector<16x3xi32> to vector<16x1xi32>
    %3 = vector.broadcast %2 : vector<16x1xi32> to vector<16x64xi32>
    %4 = arith.cmpi eq, %3, %1 : vector<16x64xi32>
    %5 = vector.extract_strided_slice %0 {offsets = [0, 1], sizes = [16, 1], strides = [1, 1]} : vector<16x3xi32> to vector<16x1xi32>
    %6 = vector.broadcast %5 : vector<16x1xi32> to vector<16x64xi32>
    %7 = arith.cmpi eq, %6, %1 : vector<16x64xi32>
    %8 = arith.ori %4, %7 : vector<16x64xi1>
    %9 = vector.extract_strided_slice %0 {offsets = [0, 2], sizes = [16, 1], strides = [1, 1]} : vector<16x3xi32> to vector<16x1xi32>
    %10 = vector.broadcast %9 : vector<16x1xi32> to vector<16x64xi32>
    %11 = arith.cmpi eq, %10, %1 : vector<16x64xi32>
    %12 = arith.ori %8, %11 : vector<16x64xi1>
    %13 = arith.extui %12 : vector<16x64xi1> to vector<16x64xi32>
    %14 = arith.sitofp %13 : vector<16x64xi32> to vector<16x64xf32>
    %c0_1 = arith.constant 0 : index
    %c0_2 = arith.constant 0 : index
    %15 = vector.load %arg2[%c0_1, %c0_2] : memref<64x128xf32, #tpu.memory_space<vmem>>, vector<64x128xf32>
    %cst = arith.constant dense<0.000000e+00> : vector<16x128xf32>
    %16 = tpu.matmul %14, %15, %cst {dimension_numbers = #tpu.dot_dimension_numbers<[1], [0], [0], [1], [0, 0, 1, 1], [], []>} : vector<16x64xf32>, vector<64x128xf32>, vector<16x128xf32> -> vector<16x128xf32>
    %cst_3 = arith.constant dense<0.000000e+00> : vector<16xf32>
    %17 = vector.multi_reduction <add>, %16, %cst_3 [1] : vector<16x128xf32> to vector<16xf32>
    %18 = vector.shape_cast %17 : vector<16xf32> to vector<16x1xf32>
    %cst_4 = arith.constant 1.280000e+02 : f32
    %19 = vector.broadcast %cst_4 : f32 to vector<16x1xf32>
    %20 = arith.divf %18, %19 : vector<16x1xf32>
    %21 = vector.broadcast %20 : vector<16x1xf32> to vector<16x128xf32>
    %22 = arith.subf %16, %21 : vector<16x128xf32>
    %23 = arith.mulf %22, %22 : vector<16x128xf32>
    %cst_5 = arith.constant dense<0.000000e+00> : vector<16xf32>
    %24 = vector.multi_reduction <add>, %23, %cst_5 [1] : vector<16x128xf32> to vector<16xf32>
    %25 = vector.shape_cast %24 : vector<16xf32> to vector<16x1xf32>
    %cst_6 = arith.constant 1.270000e+02 : f32
    %26 = vector.broadcast %cst_6 : f32 to vector<16x1xf32>
    %27 = arith.divf %25, %26 : vector<16x1xf32>
    %28 = math.sqrt %27 : vector<16x1xf32>
    %cst_7 = arith.constant 9.99999996E-13 : f32
    %29 = vector.broadcast %cst_7 : f32 to vector<16x1xf32>
    %30 = arith.addf %28, %29 : vector<16x1xf32>
    %31 = math.rsqrt %30 : vector<16x1xf32>
    %32 = vector.broadcast %31 : vector<16x1xf32> to vector<16x128xf32>
    %33 = arith.mulf %22, %32 : vector<16x128xf32>
    %c0_8 = arith.constant 0 : index
    %c0_9 = arith.constant 0 : index
    %34 = vector.load %arg3[%c0_8, %c0_9] : memref<1x128xf32, #tpu.memory_space<vmem>>, vector<1x128xf32>
    %35 = vector.broadcast %34 : vector<1x128xf32> to vector<16x128xf32>
    %36 = arith.mulf %35, %33 : vector<16x128xf32>
    %c0_10 = arith.constant 0 : index
    %c0_11 = arith.constant 0 : index
    %37 = vector.load %arg4[%c0_10, %c0_11] : memref<1x128xf32, #tpu.memory_space<vmem>>, vector<1x128xf32>
    %38 = vector.broadcast %37 : vector<1x128xf32> to vector<16x128xf32>
    %39 = arith.addf %36, %38 : vector<16x128xf32>
    %c0_12 = arith.constant 0 : index
    %c0_13 = arith.constant 0 : index
    %40 = vector.load %arg5[%c0_12, %c0_13] : memref<16x128xf32, #tpu.memory_space<vmem>>, vector<16x128xf32>
    tpu.vector_store %arg5[%c0_12, %c0_13], %39 {strides = array<i32>} : memref<16x128xf32, #tpu.memory_space<vmem>>, vector<16x128xf32>,
    return
  }
  func.func @transform_0(%arg0: i32) -> (i32, i32) {
    %c0_i32 = arith.constant 0 : i32
    %c0_i32_0 = arith.constant 0 : i32
    return %arg0, %c0_i32 : i32, i32
  }
  func.func @transform_1(%arg0: i32) -> (i32, i32) {
    %c0_i32 = arith.constant 0 : i32
    %c0_i32_0 = arith.constant 0 : i32
    %c0_i32_1 = arith.constant 0 : i32
    return %c0_i32, %c0_i32_0 : i32, i32
  }
  func.func @transform_2(%arg0: i32) -> (i32, i32) {
    %c0_i32 = arith.constant 0 : i32
    %c0_i32_0 = arith.constant 0 : i32
    %c0_i32_1 = arith.constant 0 : i32
    return %c0_i32, %c0_i32_0 : i32, i32
  }
  func.func @transform_3(%arg0: i32) -> (i32, i32) {
    %c0_i32 = arith.constant 0 : i32
    %c0_i32_0 = arith.constant 0 : i32
    %c0_i32_1 = arith.constant 0 : i32
    return %c0_i32, %c0_i32_0 : i32, i32
  }
  func.func @transform_4(%arg0: i32) -> (i32, i32) {
    %c0_i32 = arith.constant 0 : i32
    %c0_i32_0 = arith.constant 0 : i32
    return %arg0, %c0_i32 : i32, i32
  }
}

</mosaic_0001>

<llo_original>
// kernel: tpu_custom_call.1
$region0: #{tpu_custom_call.1}
  #allocation0 [shape = 'u32[]', space=smem, size = 0x4, offset = 0x4, fixed_abs, tag = 'smem constant byte address 0x4 - core index']
  #allocation1 [shape = 'u32[144,128]{1,0:T(1,128)}', space=vmem, size = 0x12000, scoped, tag = 'internal scratch']
  %s0 = inlined_call_operand.vmem [shape: s32[16,3], index: 0, kind: input, shape index: {}]
  %s1 = inlined_call_operand.hbm [shape: f32[64,128], index: 1, kind: input, shape index: {}]
  %s2 = inlined_call_operand.vmem [shape: f32[1,128], index: 2, kind: input, shape index: {}]
  %s3 = inlined_call_operand.vmem [shape: f32[1,128], index: 3, kind: input, shape index: {}]
  %s4 = inlined_call_operand.hbm [shape: f32[16,128], index: 4, kind: output, shape index: {}]
  %s5 = sld [smem:[#allocation0]]
  $region30: #{tpu_custom_call.1} parent=0
    _
  %s7 = ssub.s32 1, %s5
  %s8 = scalar_select 0, %s7, %s5
  $region1: #{tpu_custom_call.1} parent=0
    #allocation2 [shape = 'u8[32768]{0}', space=vmem, size = 0x8000, scoped, tag = 'input window, operand 1, single buffered']
    #allocation3 [shape = 's32[1]{0}', space=sflag, size = 0x4, scoped, tag = 'scoped memory for tpu_custom_call.1']
    #allocation4 [shape = 's32[1]{0}', space=sflag, size = 0x4, scoped, tag = 'scoped memory for tpu_custom_call.1']
    #allocation5 [shape = 'u8[8192]{0}', space=vmem, size = 0x2000, scoped, tag = 'output window, operand 0, single buffered']
    %9 = vsyncpa [#allocation3], 0
    %10 = vsyncpa [#allocation4], 0
    // Predicated region
    $region2: #{tpu_custom_call.1} parent=1 // pred_check
      _
    $region3: #{tpu_custom_call.1} parent=1 // pred_check_branch
      %12 = sbr.rel (0) target = $region5
    $region4: #{tpu_custom_call.1} parent=1 // pred_region
      _
    $region5: #{tpu_custom_call.1} parent=1 // pred_fallthru
      _
    // Predicated region
    $region6: #{tpu_custom_call.1} parent=1 // pred_check
      _
    $region7: #{tpu_custom_call.1} parent=1 // pred_check_branch
      %14 = sbr.rel (0) target = $region9
    $region8: #{tpu_custom_call.1} parent=1 // pred_region
      %s16 = ssub.s32 1024, 1024
      %17 = vsyncadd [#allocation3], %s16
      %s18 = sshll.u32 [#allocation2], 4
      %s19 = int_to_ptr.vmem [resolvable:$true] %s18
      %24 = dma.hbm_to_vmem [thread:$0]  %s1, 1024, %s19, [#allocation3], 128, 128, 8
    $region9: #{tpu_custom_call.1} parent=1 // pred_fallthru
      _
    // Predicated region
    $region10: #{tpu_custom_call.1} parent=1 // pred_check
      _
    $region11: #{tpu_custom_call.1} parent=1 // pred_check_branch
      %26 = sbr.rel (0) target = $region13
    $region12: #{tpu_custom_call.1} parent=1 // pred_region
      _
    $region13: #{tpu_custom_call.1} parent=1 // pred_fallthru
      _
    // Predicated region
    $region14: #{tpu_custom_call.1} parent=1 // pred_check
      _
    $region15: #{tpu_custom_call.1} parent=1 // pred_check_branch
      %28 = sbr.rel (0) target = $region17
    $region16: #{tpu_custom_call.1} parent=1 // pred_region
      _
    $region17: #{tpu_custom_call.1} parent=1 // pred_fallthru
      _
    // Predicated region
    $region18: #{tpu_custom_call.1} parent=1 // pred_check
      _
    $region19: #{tpu_custom_call.1} parent=1 // pred_check_branch
      %30 = sbr.rel (0) target = $region21
    $region20: #{tpu_custom_call.1} parent=1 // pred_region
      %31 = dma.done [#allocation3], 1024
    $region21: #{tpu_custom_call.1} parent=1 // pred_fallthru
      _
    %v32 = vld [vmem:[%s0] sm:$0xff]
    %v33 = vld [vmem:[%s0 + $0x8] sm:$0xff]
    %v34 = vlaneseq
    %v35 = vand.u32 %v34, 127
    %36 = vset.pattern.permute.xlu0 0
    %37 = vperm.xlu0 %36, %v32
    %v38 = vpop.permute.xlu0 %37
    %39 = vset.pattern.permute.xlu0 0
    %40 = vperm.xlu0 %39, %v33
    %v41 = vpop.permute.xlu0 %40
    %vm42 = vcmp.eq.s32.totalorder %v38, %v35
    %vm43 = vcmp.eq.s32.totalorder %v41, %v35
    %44 = vset.pattern.permute.xlu0 1
    %45 = vperm.xlu0 %44, %v32
    %v46 = vpop.permute.xlu0 %45
    %47 = vset.pattern.permute.xlu0 1
    %48 = vperm.xlu0 %47, %v33
    %v49 = vpop.permute.xlu0 %48
    %vm50 = vcmp.eq.s32.totalorder %v46, %v35
    %vm51 = vcmp.eq.s32.totalorder %v49, %v35
    %vm52 = vmor %vm42, %vm50
    %vm53 = vmor %vm43, %vm51
    %54 = vset.pattern.permute.xlu0 2
    %55 = vperm.xlu0 %54, %v32
    %v56 = vpop.permute.xlu0 %55
    %57 = vset.pattern.permute.xlu0 2
    %58 = vperm.xlu0 %57, %v33
    %v59 = vpop.permute.xlu0 %58
    %vm60 = vcmp.eq.s32.totalorder %v56, %v35
    %vm61 = vcmp.eq.s32.totalorder %v59, %v35
    %vm62 = vmor %vm52, %vm60
    %vm63 = vmor %vm53, %vm61
    %v64 = vsel %vm62, 1, 0
    %v65 = vsel %vm63, 1, 0
    %v66 = vcvt.s32.f32 %v64
    %v67 = vcvt.s32.f32 %v65
    %v68 = vld [vmem:[#allocation2] sm:$0xff]
    %v69 = vld [vmem:[#allocation2 + $0x8] sm:$0xff]
    %v70 = vld [vmem:[#allocation2 + $0x10] sm:$0xff]
    %v71 = vld [vmem:[#allocation2 + $0x18] sm:$0xff]
    %v72 = vld [vmem:[#allocation2 + $0x20] sm:$0xff]
    %v73 = vld [vmem:[#allocation2 + $0x28] sm:$0xff]
    %v74 = vld [vmem:[#allocation2 + $0x30] sm:$0xff]
    %v75 = vld [vmem:[#allocation2 + $0x38] sm:$0xff]
    %vm76 = vcmask 523264
    %v78 = vsel %vm76, %v66, 0
    %v81 = vsel %vm76, %v67, 0
    %83 = vmatprep.subr.mxu0 0.0
    %84 = vmatpush1.msra.mxu0 0.0
    %85 = vmatprep.subr.mxu0 0.0
    %86 = vmatpush1.msra.mxu0 0.0
    %87 = vmatprep.subr.mxu0 0.0
    %88 = vmatpush1.msra.mxu0 0.0
    %89 = vmatprep.subr.mxu0 0.0
    %90 = vmatpush1.msra.mxu0 0.0
    %91 = vmatprep.subr.mxu0 0.0
    %92 = vmatpush1.msra.mxu0 0.0
    %93 = vmatprep.subr.mxu0 0.0
    %94 = vmatpush1.msra.mxu0 0.0
    %95 = vmatprep.subr.mxu0 0.0
    %96 = vmatpush1.msra.mxu0 0.0
    %97 = vmatprep.subr.mxu0 0.0
    %98 = vmatpush1.msra.mxu0 0.0
    %99 = vmatprep.subr.mxu0 0.0
    %100 = vmatpush1.msra.mxu0 %v75
    %101 = vmatprep.subr.mxu0 0.0
    %102 = vmatpush1.msra.mxu0 %v74
    %103 = vmatprep.subr.mxu0 0.0
    %104 = vmatpush1.msra.mxu0 %v73
    %105 = vmatprep.subr.mxu0 0.0
    %106 = vmatpush1.msra.mxu0 %v72
    %107 = vmatprep.subr.mxu0 0.0
    %108 = vmatpush1.msra.mxu0 %v71
    %109 = vmatprep.subr.mxu0 0.0
    %110 = vmatpush1.msra.mxu0 %v70
    %111 = vmatprep.subr.mxu0 0.0
    %112 = vmatpush1.msra.mxu0 %v69
    %113 = vmatprep.subr.mxu0 0.0
    %114 = vmatpush1.msra.mxu0 %v68
    %115 = vmatprep.subr.mxu0 0.0
    %116 = vmatpush2.msra.mxu0 0.0
    %117 = vmatprep.subr.mxu0 0.0
    %118 = vmatpush2.msra.mxu0 0.0
    %119 = vmatprep.subr.mxu0 0.0
    %120 = vmatpush2.msra.mxu0 0.0
    %121 = vmatprep.subr.mxu0 0.0
    %122 = vmatpush2.msra.mxu0 0.0
    %123 = vmatprep.subr.mxu0 0.0
    %124 = vmatpush2.msra.mxu0 0.0
    %125 = vmatprep.subr.mxu0 0.0
    %126 = vmatpush2.msra.mxu0 0.0
    %127 = vmatprep.subr.mxu0 0.0
    %128 = vmatpush2.msra.mxu0 0.0
    %129 = vmatprep.subr.mxu0 0.0
    %130 = vmatpush2.msra.mxu0 0.0
    %131 = vmatprep.subr.mxu0 0.0
    %132 = vmatpush2.msra.mxu0 0.0
    %133 = vmatprep.subr.mxu0 0.0
    %134 = vmatpush2.msra.mxu0 0.0
    %135 = vmatprep.subr.mxu0 0.0
    %136 = vmatpush2.msra.mxu0 0.0
    %137 = vmatprep.subr.mxu0 0.0
    %138 = vmatpush2.msra.mxu0 0.0
    %139 = vmatprep.subr.mxu0 0.0
    %140 = vmatpush2.msra.mxu0 0.0
    %141 = vmatprep.subr.mxu0 0.0
    %142 = vmatpush2.msra.mxu0 0.0
    %143 = vmatprep.subr.mxu0 0.0
    %144 = vmatpush2.msra.mxu0 0.0
    %145 = vmatprep.subr.mxu0 0.0
    %146 = vmatpush2.msra.mxu0 0.0
    %147 = vmatprep.mubr.f32.mxu0 0.0
    %148 = vmatmul.mubr.f32.gmra.mxu0 %v78
    %v149 = vpop.f32.mrf.mxu0
    %v150 = vadd.f32 0.0, %v149
    %v151 = vpop.f32.mrf.mxu0
    %152 = vmatprep.mubr.f32.mxu0 0.0
    %153 = vmatmul.mubr.f32.gmra.mxu0 %v81
    %v154 = vpop.f32.mrf.mxu0
    %v155 = vadd.f32 0.0, %v154
    %v156 = vpop.f32.mrf.mxu0
    %157 = vdwg.mxu0
    %158 = vadd.xlane.f32.xlu0 %v150
    %v159 = vpop.xlane.xlu0 %158
    %160 = vadd.xlane.f32.xlu0 %v155
    %v161 = vpop.xlane.xlu0 %160
    %v162 = vrcp.pop 128.0
    %v163 = vmul.f32 %v159, %v162
    %v164 = vmul.f32 %v161, %v162
    %v165 = vsub.f32 %v150, %v163
    %v166 = vsub.f32 %v155, %v164
    %v167 = vmul.f32 %v165, %v165
    %v168 = vmul.f32 %v166, %v166
    %169 = vadd.xlane.f32.xlu0 %v167
    %v170 = vpop.xlane.xlu0 %169
    %171 = vadd.xlane.f32.xlu0 %v168
    %v172 = vpop.xlane.xlu0 %171
    %v173 = vrcp.pop 127.0
    %v174 = vmul.f32 %v170, %v173
    %v175 = vmul.f32 %v172, %v173
    %v176 = vrsqrt.pop %v174
    %v177 = vmul.f32 %v174, %v176
    %vm178 = vcmp.eq.f32.partialorder %v174, inf
    %v179 = vsel %vm178, %v174, %v177
    %vm180 = vcmp.eq.f32.partialorder %v174, 0.0
    %v181 = vand.u32 %v174, 2147483648
    %v182 = vsel %vm180, %v181, %v179
    %v183 = vrsqrt.pop %v175
    %v184 = vmul.f32 %v175, %v183
    %vm185 = vcmp.eq.f32.partialorder %v175, inf
    %v186 = vsel %vm185, %v175, %v184
    %vm187 = vcmp.eq.f32.partialorder %v175, 0.0
    %v188 = vand.u32 %v175, 2147483648
    %v189 = vsel %vm187, %v188, %v186
    %v190 = vadd.f32 %v182, 1e-12
    %v191 = vadd.f32 %v189, 1e-12
    %v192 = vrsqrt.pop %v190
    %v193 = vrsqrt.pop %v191
    %v194 = vmul.f32 %v165, %v192
    %v195 = vmul.f32 %v166, %v193
    %v196 = vld [vmem:[%s2] sm:$0x1]
    %v198 = vlaneseq
    %v199 = vshrl.u32 %v198, 7
    %v200 = vsub.s32 0, %v199
    %v201 = vrot.slane %v196, %v200
    %v203 = vmul.f32 %v201, %v194
    %v204 = vmul.f32 %v201, %v195
    %v205 = vld [vmem:[%s3] sm:$0x1]
    %v207 = vlaneseq
    %v208 = vshrl.u32 %v207, 7
    %v209 = vsub.s32 0, %v208
    %v210 = vrot.slane %v205, %v209
    %v212 = vadd.f32 %v203, %v210
    %v213 = vadd.f32 %v204, %v210
    %214 = vst [vmem:[#allocation5] sm:$0xff] %v212
    %215 = vst [vmem:[#allocation5 + $0x8] sm:$0xff] %v213
    // Predicated region
    $region22: #{tpu_custom_call.1} parent=1 // pred_check
      _
    $region23: #{tpu_custom_call.1} parent=1 // pred_check_branch
      %217 = sbr.rel (0) target = $region25
    $region24: #{tpu_custom_call.1} parent=1 // pred_region
      %s219 = ssub.s32 256, 256
      %220 = vsyncadd [#allocation4], %s219
      %s221 = sshll.u32 [#allocation5], 4
      %s222 = int_to_ptr.vmem [resolvable:$true] %s221
      %227 = dma.vmem_to_hbm [thread:$0]  %s222, 256, %s4, [#allocation4], 128, 128, 8
    $region25: #{tpu_custom_call.1} parent=1 // pred_fallthru
      _
    // Predicated region
    $region26: #{tpu_custom_call.1} parent=1 // pred_check
      _
    $region27: #{tpu_custom_call.1} parent=1 // pred_check_branch
      %229 = sbr.rel (0) target = $region29
    $region28: #{tpu_custom_call.1} parent=1 // pred_region
      %230 = dma.done [#allocation4], 256
    $region29: #{tpu_custom_call.1} parent=1 // pred_fallthru
      _
    %231 = vsyncpa [#allocation3], 1
    %232 = vsyncpa [#allocation4], 1

</llo_original>
